<compile_context>
chip_gen: v5e
topology: v5e:2x2
jax: 0.10.0
libtpu: 0.0.40
codegen_flags: <defaults>
</compile_context>

<pallas_src>
import functools

import jax
import jax.numpy as jnp
from jax.experimental import pallas as pl
from jax.experimental.pallas import tpu as pltpu


# ----------------------------------------------------------------------------
# Generation-aware budgets (v5e/v6e: 128 MiB VMEM; v7x: 64 MiB, 2 TensorCores)
# ----------------------------------------------------------------------------
def _tpu_budgets():
    try:
        vmem = pltpu.get_tpu_info().vmem_capacity_bytes
    except Exception:
        vmem = 64 * 1024 * 1024  # assume the smaller (v7x-like) part
    if vmem >= 100 * 1024 * 1024:  # v5e / v6e (128 MiB physical VMEM)
        return {"vmem_limit": 64 * 1024 * 1024,
                "attn_budget": 24 * 1024 * 1024,
                "tile_prefs": (1024, 512, 256, 128)}
    return {"vmem_limit": 32 * 1024 * 1024,  # v7x-safe scoped limit
            "attn_budget": 8 * 1024 * 1024,
            "tile_prefs": (512, 256, 128)}


# ----------------------------------------------------------------------------
# Tile-size helpers
# ----------------------------------------------------------------------------
def _pick_tile(dim, preferred):
    """Largest preferred tile that evenly divides `dim`; else the full dim."""
    for t in preferred:
        if dim >= t and dim % t == 0:
            return t
    return dim


def _largest_divisor_leq(n, cap):
    cap = max(1, min(n, cap))
    for d in range(cap, 0, -1):
        if n % d == 0:
            return d
    return 1


def _fit_linear_tiles(M, N, K, prefs, budget, *, x_itemsize, out_itemsize):
    """Pick (tm, tn, tk) from prefs, then shrink until the VMEM estimate fits."""
    tm = _pick_tile(M, prefs)
    tn = _pick_tile(N, prefs)
    tk = _pick_tile(K, prefs)

    def est(tm, tn, tk):
        # double-buffered x / w / bias blocks + double-buffered out + f32 acc
        return (2 * (tm * tk * x_itemsize + tk * tn * 2 + tn * 4)
                + 2 * tm * tn * out_itemsize + tm * tn * 4)

    while est(tm, tn, tk) > budget and max(tm, tn, tk) > 128:
        if tm >= tn and tm >= tk and tm > 128:
            tm = _largest_divisor_leq(M, tm // 2)
        elif tk >= tn and tk > 128:
            tk = _largest_divisor_leq(K, tk // 2)
        elif tn > 128:
            tn = _largest_divisor_leq(N, tn // 2)
        else:
            break
    return tm, tn, tk


# ----------------------------------------------------------------------------
# Kernels
# ----------------------------------------------------------------------------
def _matmul_bias_acc_kernel(x_ref, w_ref, b_ref, o_ref, acc_ref):
    """bf16 output: f32 VMEM accumulator; bias-add + cast fused into last K step."""
    kk = pl.program_id(2)

    @pl.when(kk == 0)
    def _():
        acc_ref[...] = jnp.zeros_like(acc_ref)

    acc_ref[...] += jnp.dot(x_ref[...].astype(jnp.bfloat16), w_ref[...],
                            preferred_element_type=jnp.float32)

    @pl.when(kk == pl.num_programs(2) - 1)
    def _():
        o_ref[...] = (acc_ref[...] + b_ref[...]).astype(o_ref.dtype)


def _matmul_bias_f32_kernel(x_ref, w_ref, b_ref, o_ref):
    """f32 output: accumulate directly into the resident o_ref (no scratch)."""
    kk = pl.program_id(2)
    p = jnp.dot(x_ref[...].astype(jnp.bfloat16), w_ref[...],
                preferred_element_type=jnp.float32)

    @pl.when(kk == 0)
    def _():
        o_ref[...] = p + b_ref[...]

    @pl.when(kk > 0)
    def _():
        o_ref[...] += p


def _attn_kernel(q_ref, k_ref, v_ref, attn_ref, out_ref, *, inv_scale):
    # q: (bb, tq, d_k), k: (bb, n_k, d_k), v: (bb, n_k, d_v)  -- all bf16
    # Apply 1/scale to q (tq*d_k elems) instead of the scores (tq*n_k elems).
    q = q_ref[...] * inv_scale
    k = k_ref[...]
    v = v_ref[...]
    s = jnp.einsum("bqd,bkd->bqk", q, k, preferred_element_type=jnp.float32)
    # softmax over the last axis (torch Softmax(dim=2)) in f32
    s = s - jnp.max(s, axis=-1, keepdims=True)
    p = jnp.exp(s)
    denom = jnp.sum(p, axis=-1, keepdims=True)
    # Exact division for the *returned* attn tensor so rows sum to 1.
    attn = p / denom
    attn_ref[...] = attn.astype(attn_ref.dtype)
    out_ref[...] = jnp.einsum("bqk,bkd->bqd", attn.astype(v.dtype), v,
                              preferred_element_type=jnp.float32
                              ).astype(out_ref.dtype)


# ----------------------------------------------------------------------------
# Pallas wrappers
# ----------------------------------------------------------------------------
def linear(x, w, b, *, out_dtype=jnp.bfloat16):
    """x: (M, K) @ w: (K, N) + b: (N,) -> (M, N). Tiled, pipelined, MXU in bf16."""
    M, K = x.shape
    K2, N = w.shape
    assert K == K2
    cfg = _tpu_budgets()
    tm, tn, tk = _fit_linear_tiles(
        M, N, K, cfg["tile_prefs"], cfg["vmem_limit"] // 2,
        x_itemsize=jnp.dtype(x.dtype).itemsize,
        out_itemsize=jnp.dtype(out_dtype).itemsize)
    grid = (M // tm, N // tn, K // tk)

    if jnp.dtype(out_dtype) == jnp.dtype(jnp.float32):
        kernel, scratch = _matmul_bias_f32_kernel, []
    else:
        kernel, scratch = _matmul_bias_acc_kernel, [pltpu.VMEM((tm, tn), jnp.float32)]

    return pl.pallas_call(
        kernel,
        out_shape=jax.ShapeDtypeStruct((M, N), out_dtype),
        grid=grid,
        in_specs=[
            pl.BlockSpec((tm, tk), lambda i, j, k: (i, k)),
            pl.BlockSpec((tk, tn), lambda i, j, k: (k, j)),
            pl.BlockSpec((1, tn), lambda i, j, k: (0, j)),
        ],
        out_specs=pl.BlockSpec((tm, tn), lambda i, j, k: (i, j)),
        scratch_shapes=scratch,
        compiler_params=pltpu.CompilerParams(
            dimension_semantics=("parallel", "parallel", "arbitrary"),
            vmem_limit_bytes=cfg["vmem_limit"],
        ),
    )(x, w, b.reshape(1, N).astype(jnp.float32))


def scaled_dot_product_attention(q, k, v, scale):
    """q: (B, n_q, d_k), k: (B, n_k, d_k), v: (B, n_k, d_v); B = n_head*batch."""
    B, n_q, d_k = q.shape
    _, n_k, _ = k.shape
    _, _, d_v = v.shape
    compute_dtype = jnp.bfloat16
    q = q if q.dtype == compute_dtype else q.astype(compute_dtype)
    k = k if k.dtype == compute_dtype else k.astype(compute_dtype)
    v = v if v.dtype == compute_dtype else v.astype(compute_dtype)
    inv_scale = 1.0 / float(scale)

    cfg = _tpu_budgets()
    budget = cfg["attn_budget"]

    # q-axis tile; n_k stays untiled because the full attn row is returned.
    tq = _pick_tile(n_q, cfg["tile_prefs"])

    def per_slice(t):
        in_b = (t * d_k + n_k * d_k + n_k * d_v) * 2            # bf16 inputs
        out_b = t * n_k * 4 + t * d_v * 2                       # f32 attn + bf16 out
        return 2 * (in_b + out_b)                                # double-buffered

    # Guard the untiled-n_k attn tile against the VMEM budget (v7x: 64 MiB).
    while per_slice(tq) > budget and tq > 8:
        new_tq = _largest_divisor_leq(n_q, max(8, tq // 2))
        if new_tq == tq:
            break
        tq = new_tq

    # Batch as many (head, batch) slices per step as the budget allows.
    bb = _largest_divisor_leq(B, max(1, budget // max(per_slice(tq), 1)))
    # Keep >= 2 steps on the parallel axes so both v7x TensorCores get work.
    if (B // bb) * (n_q // tq) < 2 and B > 1:
        bb = _largest_divisor_leq(B, max(1, B // 2))

    kernel = functools.partial(_attn_kernel, inv_scale=inv_scale)
    attn, out = pl.pallas_call(
        kernel,
        out_shape=(
            jax.ShapeDtypeStruct((B, n_q, n_k), jnp.float32),    # returned attn
            jax.ShapeDtypeStruct((B, n_q, d_v), compute_dtype),  # feeds fc_o (bf16)
        ),
        grid=(B // bb, n_q // tq),
        in_specs=[
            pl.BlockSpec((bb, tq, d_k), lambda b, qi: (b, qi, 0)),
            pl.BlockSpec((bb, n_k, d_k), lambda b, qi: (b, 0, 0)),
            pl.BlockSpec((bb, n_k, d_v), lambda b, qi: (b, 0, 0)),
        ],
        out_specs=(
            pl.BlockSpec((bb, tq, n_k), lambda b, qi: (b, qi, 0)),
            pl.BlockSpec((bb, tq, d_v), lambda b, qi: (b, qi, 0)),
        ),
        compiler_params=pltpu.CompilerParams(
            dimension_semantics=("parallel", "parallel"),
            vmem_limit_bytes=cfg["vmem_limit"],
        ),
    )(q, k, v)
    return attn, out


# ----------------------------------------------------------------------------
# MultiHeadAttention module (parameters + forward)
# ----------------------------------------------------------------------------
def init_mha_params(key, n_head, d_k_, d_v_, d_k, d_v, d_o):
    """Deterministic init mirroring nn.Linear shapes (stored as (in, out)).

    Weights are pre-cast to bf16 ONCE here (no per-forward casts)."""
    def linear_params(k, d_in, d_out):
        kw, kb = jax.random.split(k)
        bound = float(d_in) ** -0.5
        w = jax.random.uniform(kw, (d_in, d_out), jnp.float32, -bound, bound)
        b = jax.random.uniform(kb, (d_out,), jnp.float32, -bound, bound)
        return w.astype(jnp.bfloat16), b

    k1, k2, k3, k4 = jax.random.split(key, 4)
    return {
        "fc_q": linear_params(k1, d_k_, n_head * d_k),
        "fc_k": linear_params(k2, d_k_, n_head * d_k),
        "fc_v": linear_params(k3, d_v_, n_head * d_v),
        "fc_o": linear_params(k4, n_head * d_v, d_o),
    }


def multi_head_attention(params, q, k, v, *, n_head, d_k, d_v):
    # TODO(synk): optional boolean `mask` (masked_fill with -inf) not wired in.
    batch, n_q, _ = q.shape
    _, n_k, _ = k.shape
    _, n_v, _ = v.shape
    scale = float(d_k) ** 0.5

    # --- QKV projections (tiled Pallas matmul kernels, bf16 outputs) ---
    wq, bq = params["fc_q"]
    wk, bk = params["fc_k"]
    wv, bv = params["fc_v"]
    q_p = linear(q.reshape(batch * n_q, -1), wq, bq, out_dtype=jnp.bfloat16)
    k_p = linear(k.reshape(batch * n_k, -1), wk, bk, out_dtype=jnp.bfloat16)
    v_p = linear(v.reshape(batch * n_v, -1), wv, bv, out_dtype=jnp.bfloat16)

    # --- split heads (bf16): (batch, n, n_head, d) -> (n_head*batch, n, d) ---
    def split_heads(x, n, d):
        x = x.reshape(batch, n, n_head, d)
        x = jnp.transpose(x, (2, 0, 1, 3))
        return x.reshape(n_head * batch, n, d)

    q_h = split_heads(q_p, n_q, d_k)
    k_h = split_heads(k_p, n_k, d_k)
    v_h = split_heads(v_p, n_v, d_v)

    # --- scaled dot-product attention (batched-head Pallas kernel) ---
    attn, out = scaled_dot_product_attention(q_h, k_h, v_h, scale)

    # --- merge heads (bf16): (n_head*batch, n_q, d_v) -> (batch, n_q, n_head*d_v) ---
    out = out.reshape(n_head, batch, n_q, d_v)
    out = jnp.transpose(out, (1, 2, 0, 3)).reshape(batch, n_q, n_head * d_v)

    # --- output projection (tiled Pallas matmul kernel, f32 output) ---
    wo, bo = params["fc_o"]
    out = linear(out.reshape(batch * n_q, -1), wo, bo,
                 out_dtype=jnp.float32).reshape(batch, n_q, -1)
    return attn, out


# ----------------------------------------------------------------------------
# Pure-JAX reference (same bf16 weights, f32 activation path) for sanity check
# ----------------------------------------------------------------------------
def _reference_forward(params, q, k, v, *, n_head, d_k, d_v):
    batch, n_q, _ = q.shape
    _, n_k, _ = k.shape
    _, n_v, _ = v.shape

    def lin(x, wb):
        w, b = wb
        return x @ w.astype(jnp.float32) + b

    q_p = lin(q, params["fc_q"])
    k_p = lin(k, params["fc_k"])
    v_p = lin(v, params["fc_v"])

    def split(x, n, d):
        return jnp.transpose(x.reshape(batch, n, n_head, d),
                             (2, 0, 1, 3)).reshape(-1, n, d)

    qh, kh, vh = split(q_p, n_q, d_k), split(k_p, n_k, d_k), split(v_p, n_v, d_v)
    s = jnp.einsum("bqd,bkd->bqk", qh, kh) / (float(d_k) ** 0.5)
    attn = jax.nn.softmax(s, axis=-1)
    out = jnp.einsum("bqk,bkd->bqd", attn, vh)
    out = jnp.transpose(out.reshape(n_head, batch, n_q, d_v),
                        (1, 2, 0, 3)).reshape(batch, n_q, -1)
    wo, bo = params["fc_o"]
    return attn, out @ wo.astype(jnp.float32) + bo


# ----------------------------------------------------------------------------
if __name__ == "__main__":
    n_head, d_k, d_v = 2, 16, 16
    d_k_, d_v_, d_o = 32, 32, 32
    batch, seq = 2, 8

    key = jax.random.PRNGKey(0)
    kp, kq, kk, kv = jax.random.split(key, 4)

    params = init_mha_params(kp, n_head, d_k_, d_v_, d_k, d_v, d_o)
    q = jax.random.normal(kq, (batch, seq, d_k_), jnp.float32)
    k = jax.random.normal(kk, (batch, seq, d_k_), jnp.float32)
    v = jax.random.normal(kv, (batch, seq, d_v_), jnp.float32)

    attn, out = multi_head_attention(params, q, k, v,
                                     n_head=n_head, d_k=d_k, d_v=d_v)
    jax.block_until_ready((attn, out))

    assert attn.shape == (n_head * batch, seq, seq)
    assert out.shape == (batch, seq, d_o)
    # attention rows sum to 1 (exact softmax division)
    assert jnp.allclose(jnp.sum(attn, axis=-1), 1.0, atol=1e-3)

    # loose check vs. pure-JAX reference (bf16 activation path -> ~1e-2 rel err)
    attn_ref, out_ref = _reference_forward(params, q, k, v,
                                           n_head=n_head, d_k=d_k, d_v=d_v)
    assert jnp.allclose(attn, attn_ref, rtol=0.1, atol=0.1)
    assert jnp.allclose(out, out_ref, rtol=0.1, atol=0.1)

    print("KERNEL_OK")
</pallas_src>

<mosaic_0001>
module attributes {stable_mosaic.version = 11 : i64} {
  func.func @_matmul_bias_acc_kernel(%arg0: i32, %arg1: i32, %arg2: i32, %arg3: memref<16x32xf32, #tpu.memory_space<vmem>>, %arg4: memref<32x32xbf16, #tpu.memory_space<vmem>>, %arg5: memref<1x32xf32, #tpu.memory_space<vmem>>, %arg6: memref<16x32xbf16, #tpu.memory_space<vmem>>, %arg7: memref<16x32xf32, #tpu.memory_space<vmem>>) attributes {dimension_semantics = [#tpu.dimension_semantics<parallel>, #tpu.dimension_semantics<parallel>, #tpu.dimension_semantics<arbitrary>], iteration_bounds = array<i64: 1, 1, 1>, scalar_prefetch = 0 : i64, scratch_operands = 1 : i64, tpu.core_type = #tpu.core_type<tc>, window_params = [{transform_indices = @transform_0, window_bounds = array<i64: 16, 32>}, {transform_indices = @transform_1, window_bounds = array<i64: 32, 32>}, {transform_indices = @transform_2, window_bounds = array<i64: 1, 32>}, {transform_indices = @transform_3, window_bounds = array<i64: 16, 32>}]} {
    %c0_i32 = arith.constant 0 : i32
    %0 = arith.cmpi eq, %arg2, %c0_i32 : i32
    %1 = arith.extui %0 : i1 to i32
    %c0_i32_0 = arith.constant 0 : i32
    %2 = arith.cmpi ne, %1, %c0_i32_0 : i32
    scf.if %2 {
      %cst_10 = arith.constant 0.000000e+00 : f32
      %13 = vector.broadcast %cst_10 : f32 to vector<16x32xf32>
      %c0_11 = arith.constant 0 : index
      %c0_12 = arith.constant 0 : index
      %14 = vector.load %arg7[%c0_11, %c0_12] : memref<16x32xf32, #tpu.memory_space<vmem>>, vector<16x32xf32>
      tpu.vector_store %arg7[%c0_11, %c0_12], %13 {strides = array<i32>} : memref<16x32xf32, #tpu.memory_space<vmem>>, vector<16x32xf32>,
    } else {
    }
    %c0 = arith.constant 0 : index
    %c0_1 = arith.constant 0 : index
    %3 = vector.load %arg7[%c0, %c0_1] : memref<16x32xf32, #tpu.memory_space<vmem>>, vector<16x32xf32>
    %c0_2 = arith.constant 0 : index
    %c0_3 = arith.constant 0 : index
    %4 = vector.load %arg3[%c0_2, %c0_3] : memref<16x32xf32, #tpu.memory_space<vmem>>, vector<16x32xf32>
    %5 = arith.truncf %4 : vector<16x32xf32> to vector<16x32xbf16>
    %c0_4 = arith.constant 0 : index
    %c0_5 = arith.constant 0 : index
    %6 = vector.load %arg4[%c0_4, %c0_5] : memref<32x32xbf16, #tpu.memory_space<vmem>>, vector<32x32xbf16>
    %cst = arith.constant dense<0.000000e+00> : vector<16x32xf32>
    %7 = tpu.matmul %5, %6, %cst {dimension_numbers = #tpu.dot_dimension_numbers<[1], [0], [0], [1], [0, 0, 1, 1], [], []>} : vector<16x32xbf16>, vector<32x32xbf16>, vector<16x32xf32> -> vector<16x32xf32>
    %8 = arith.addf %3, %7 : vector<16x32xf32>
    %c0_6 = arith.constant 0 : index
    %c0_7 = arith.constant 0 : index
    %9 = vector.load %arg7[%c0_6, %c0_7] : memref<16x32xf32, #tpu.memory_space<vmem>>, vector<16x32xf32>
    tpu.vector_store %arg7[%c0_6, %c0_7], %8 {strides = array<i32>} : memref<16x32xf32, #tpu.memory_space<vmem>>, vector<16x32xf32>,
    %c0_i32_8 = arith.constant 0 : i32
    %10 = arith.cmpi eq, %arg2, %c0_i32_8 : i32
    %11 = arith.extui %10 : i1 to i32
    %c0_i32_9 = arith.constant 0 : i32
    %12 = arith.cmpi ne, %11, %c0_i32_9 : i32
    scf.if %12 {
      %c0_10 = arith.constant 0 : index
      %c0_11 = arith.constant 0 : index
      %13 = vector.load %arg7[%c0_10, %c0_11] : memref<16x32xf32, #tpu.memory_space<vmem>>, vector<16x32xf32>
      %c0_12 = arith.constant 0 : index
      %c0_13 = arith.constant 0 : index
      %14 = vector.load %arg5[%c0_12, %c0_13] : memref<1x32xf32, #tpu.memory_space<vmem>>, vector<1x32xf32>
      %15 = vector.broadcast %14 : vector<1x32xf32> to vector<16x32xf32>
      %16 = arith.addf %13, %15 : vector<16x32xf32>
      %17 = arith.truncf %16 : vector<16x32xf32> to vector<16x32xbf16>
      %c0_14 = arith.constant 0 : index
      %c0_15 = arith.constant 0 : index
      %18 = vector.load %arg6[%c0_14, %c0_15] : memref<16x32xbf16, #tpu.memory_space<vmem>>, vector<16x32xbf16>
      tpu.vector_store %arg6[%c0_14, %c0_15], %17 {strides = array<i32>} : memref<16x32xbf16, #tpu.memory_space<vmem>>, vector<16x32xbf16>,
    } else {
    }
    return
  }
  func.func @transform_0(%arg0: i32, %arg1: i32, %arg2: i32) -> (i32, i32) {
    %c0_i32 = arith.constant 0 : i32
    return %arg0, %arg2 : i32, i32
  }
  func.func @transform_1(%arg0: i32, %arg1: i32, %arg2: i32) -> (i32, i32) {
    %c0_i32 = arith.constant 0 : i32
    return %arg2, %arg1 : i32, i32
  }
  func.func @transform_2(%arg0: i32, %arg1: i32, %arg2: i32) -> (i32, i32) {
    %c0_i32 = arith.constant 0 : i32
    %c0_i32_0 = arith.constant 0 : i32
    return %c0_i32, %arg1 : i32, i32
  }
  func.func @transform_3(%arg0: i32, %arg1: i32, %arg2: i32) -> (i32, i32) {
    %c0_i32 = arith.constant 0 : i32
    return %arg0, %arg1 : i32, i32
  }
}

</mosaic_0001>

<llo_original>
// kernel: tpu_custom_call.1
$region0: #{tpu_custom_call.1}
  #allocation0 [shape = 'u32[]', space=smem, size = 0x4, offset = 0x4, fixed_abs, tag = 'smem constant byte address 0x4 - core index']
  #allocation1 [shape = 'u32[72,128]{1,0:T(1,128)}', space=vmem, size = 0x9000, scoped, tag = 'internal scratch']
  #allocation2 [shape = 'f32[16,32]{1,0:T(8,128)}', space=vmem, size = 0x2000, scoped, tag = 'scratch operand']
  %s0 = inlined_call_operand.hbm [shape: f32[16,32], index: 0, kind: input, shape index: {}]
  %s1 = inlined_call_operand.hbm [shape: bf16[32,32], index: 1, kind: input, shape index: {}]
  %s2 = inlined_call_operand.vmem [shape: f32[1,32], index: 2, kind: input, shape index: {}]
  %s3 = inlined_call_operand.hbm [shape: bf16[16,32], index: 3, kind: output, shape index: {}]
  %s4 = sld [smem:[#allocation0]]
  $region38: #{tpu_custom_call.1} parent=0
    _
  %s6 = ssub.s32 1, %s4
  %s7 = scalar_select 0, %s6, %s4
  $region1: #{tpu_custom_call.1} parent=0
    #allocation3 [shape = 'u8[8192]{0}', space=vmem, size = 0x2000, scoped, tag = 'input window, operand 0, single buffered']
    #allocation4 [shape = 's32[1]{0}', space=sflag, size = 0x4, scoped, tag = 'scoped memory for tpu_custom_call.1']
    #allocation5 [shape = 's32[1]{0}', space=sflag, size = 0x4, scoped, tag = 'scoped memory for tpu_custom_call.1']
    #allocation6 [shape = 'u8[8192]{0}', space=vmem, size = 0x2000, scoped, tag = 'input window, operand 1, single buffered']
    #allocation7 [shape = 's32[1]{0}', space=sflag, size = 0x4, scoped, tag = 'scoped memory for tpu_custom_call.1']
    #allocation8 [shape = 'u8[4096]{0}', space=vmem, size = 0x1000, scoped, tag = 'output window, operand 0, single buffered']
    %8 = vsyncpa [#allocation4], 0
    %9 = vsyncpa [#allocation7], 0
    %10 = vsyncpa [#allocation5], 0
    // Predicated region
    $region2: #{tpu_custom_call.1} parent=1 // pred_check
      _
    $region3: #{tpu_custom_call.1} parent=1 // pred_check_branch
      %12 = sbr.rel (0) target = $region5
    $region4: #{tpu_custom_call.1} parent=1 // pred_region
      %14 = vsyncadd [#allocation4], 0
      %s15 = sshll.u32 %s0, 4
      %s16 = int_to_ptr.hbm [resolvable:$true] %s15
      %s17 = sshll.u32 [#allocation3], 4
      %s18 = int_to_ptr.vmem [resolvable:$true] %s17
      %23 = dma.hbm_to_vmem [thread:$0]  %s16, 256, %s18, [#allocation4], 128, 128, 8
    $region5: #{tpu_custom_call.1} parent=1 // pred_fallthru
      _
    // Predicated region
    $region6: #{tpu_custom_call.1} parent=1 // pred_check
      _
    $region7: #{tpu_custom_call.1} parent=1 // pred_check_branch
      %25 = sbr.rel (0) target = $region9
    $region8: #{tpu_custom_call.1} parent=1 // pred_region
      %27 = vsyncadd [#allocation7], 0
      %s28 = sshll.u32 %s1, 4
      %s29 = int_to_ptr.hbm [resolvable:$true] %s28
      %s30 = sshll.u32 [#allocation6], 4
      %s31 = int_to_ptr.vmem [resolvable:$true] %s30
      %36 = dma.hbm_to_vmem [thread:$0]  %s29, 256, %s31, [#allocation7], 64, 64, 4
    $region9: #{tpu_custom_call.1} parent=1 // pred_fallthru
      _
    // Predicated region
    $region10: #{tpu_custom_call.1} parent=1 // pred_check
      _
    $region11: #{tpu_custom_call.1} parent=1 // pred_check_branch
      %38 = sbr.rel (0) target = $region13
    $region12: #{tpu_custom_call.1} parent=1 // pred_region
      _
    $region13: #{tpu_custom_call.1} parent=1 // pred_fallthru
      _
    // Predicated region
    $region14: #{tpu_custom_call.1} parent=1 // pred_check
      _
    $region15: #{tpu_custom_call.1} parent=1 // pred_check_branch
      %40 = sbr.rel (0) target = $region17
    $region16: #{tpu_custom_call.1} parent=1 // pred_region
      %42 = dma.done [#allocation4], 256
    $region17: #{tpu_custom_call.1} parent=1 // pred_fallthru
      _
    // Predicated region
    $region18: #{tpu_custom_call.1} parent=1 // pred_check
      _
    $region19: #{tpu_custom_call.1} parent=1 // pred_check_branch
      %44 = sbr.rel (0) target = $region21
    $region20: #{tpu_custom_call.1} parent=1 // pred_region
      %46 = dma.done [#allocation7], 256
    $region21: #{tpu_custom_call.1} parent=1 // pred_fallthru
      _
    %p48 = scmp.eq.s32.totalorder 0, 0
    // Predicated region
    $region22: #{tpu_custom_call.1} parent=1 // pred_check
      %p49 = pneg %p48
    $region23: #{tpu_custom_call.1} parent=1 // pred_check_branch
      %51 = sbr.rel (%p49) target = $region25
    $region24: #{tpu_custom_call.1} parent=1 // pred_region
      %vm52 = vcmask 261120
      %53 = vst.msk [vmem:[#allocation2] sm:$0xff] %vm52, 0.0
      %54 = vst.msk [vmem:[#allocation2 + $0x8] sm:$0xff] %vm52, 0.0
    $region25: #{tpu_custom_call.1} parent=1 // pred_fallthru
      _
    %v55 = vld [vmem:[#allocation2] sm:$0xff]
    %v56 = vld [vmem:[#allocation2 + $0x8] sm:$0xff]
    %v57 = vld [vmem:[#allocation3] sm:$0xff]
    %v58 = vld [vmem:[#allocation3 + $0x8] sm:$0xff]
    %v59 = vpack.c.bf16 %v58, %v57
    %v60 = vld [vmem:[#allocation6] sm:$0xf]
    %v61 = vld [vmem:[#allocation6 + $0x4] sm:$0xf]
    %v62 = vld [vmem:[#allocation6 + $0x8] sm:$0xf]
    %v63 = vld [vmem:[#allocation6 + $0xc] sm:$0xf]
    %v68 = vunpack.c.l.b16 %v60
    %v69 = vunpack.c.l.b16 %v61
    %v70 = vunpack.c.l.b16 %v62
    %v71 = vunpack.c.l.b16 %v63
    %v72 = vpack.c.b16 %v69, %v68
    %v73 = vpack.c.b16 %v71, %v70
    %vm76 = vcmask 261120
    %v78 = vsel %vm76, %v59, 0
    %80 = vmatpush.bf16.msra.mxu0 0
    %81 = vmatpush.bf16.msra.mxu0 0
    %82 = vmatpush.bf16.msra.mxu0 0
    %83 = vmatpush.bf16.msra.mxu0 0
    %84 = vmatpush.bf16.msra.mxu0 0
    %85 = vmatpush.bf16.msra.mxu0 0
    %86 = vmatpush.bf16.msra.mxu0 %v73
    %87 = vmatpush.bf16.msra.mxu0 %v72
    %88 = vmatmul.bf16.gmra.mxu0 %v78
    %v89 = vpop.f32.mrf.mxu0
    %v90 = vadd.f32 0.0, %v89
    %v91 = vpop.f32.mrf.mxu0
    %v92 = vadd.f32 0.0, %v91
    %93 = vdwg.mxu0
    %v94 = vadd.f32 %v55, %v90
    %v95 = vadd.f32 %v56, %v92
    %96 = vst.msk [vmem:[#allocation2] sm:$0xff] %vm76, %v94
    %97 = vst.msk [vmem:[#allocation2 + $0x8] sm:$0xff] %vm76, %v95
    // Predicated region
    $region26: #{tpu_custom_call.1} parent=1 // pred_check
      %p98 = pneg %p48
    $region27: #{tpu_custom_call.1} parent=1 // pred_check_branch
      %100 = sbr.rel (%p98) target = $region29
    $region28: #{tpu_custom_call.1} parent=1 // pred_region
      %v101 = vld [vmem:[#allocation2] sm:$0xff]
      %v102 = vld [vmem:[#allocation2 + $0x8] sm:$0xff]
      %v103 = vld [vmem:[%s2] sm:$0x1]
      %v105 = vperm.slane %v103, 0
      %v107 = vadd.f32 %v101, %v105
      %v108 = vadd.f32 %v102, %v105
      %v109 = vpack.c.bf16 %v107, %v107
      %v110 = vpack.c.bf16 %v108, %v108
      %vm111 = vcmask 257024
      %112 = vst.msk [vmem:[#allocation8] sm:$0xf] %vm111, %v109
      %113 = vst.msk [vmem:[#allocation8 + $0x4] sm:$0xf] %vm111, %v110
    $region29: #{tpu_custom_call.1} parent=1 // pred_fallthru
      _
    // Predicated region
    $region30: #{tpu_custom_call.1} parent=1 // pred_check
      _
    $region31: #{tpu_custom_call.1} parent=1 // pred_check_branch
      %115 = sbr.rel (0) target = $region33
    $region32: #{tpu_custom_call.1} parent=1 // pred_region
      %117 = vsyncadd [#allocation5], 0
      %s118 = sshll.u32 [#allocation8], 4
      %s119 = int_to_ptr.vmem [resolvable:$true] %s118
      %s120 = sshll.u32 %s3, 4
      %s121 = int_to_ptr.hbm [resolvable:$true] %s120
      %126 = dma.vmem_to_hbm [thread:$0]  %s119, 128, %s121, [#allocation5], 64, 64, 4
    $region33: #{tpu_custom_call.1} parent=1 // pred_fallthru
      _
    // Predicated region
    $region34: #{tpu_custom_call.1} parent=1 // pred_check
      _
    $region35: #{tpu_custom_call.1} parent=1 // pred_check_branch
      %128 = sbr.rel (0) target = $region37
    $region36: #{tpu_custom_call.1} parent=1 // pred_region
      %130 = dma.done [#allocation5], 128
    $region37: #{tpu_custom_call.1} parent=1 // pred_fallthru
      _
    %131 = vsyncpa [#allocation4], 1
    %132 = vsyncpa [#allocation7], 1
    %133 = vsyncpa [#allocation5], 1

</llo_original>
